<compile_context>
chip_gen: v5e
topology: v5e:2x2
jax: 0.10.0
libtpu: 0.0.40
codegen_flags: <defaults>
</compile_context>

<pallas_src>
import functools

import jax
import jax.numpy as jnp
from jax.experimental import pallas as pl
from jax.experimental.pallas import tpu as pltpu


def _round_up(x, m):
    return (x + m - 1) // m * m


def _cb_focal_kernel(logits_ref, labels_ref, wcls_ref, acc_ref, *, gamma):
    # acc_ref: resident (1, C) f32 accumulator (same block for every grid step).
    @pl.when(pl.program_id(0) == 0)
    def _init():
        acc_ref[...] = jnp.zeros_like(acc_ref)

    x = logits_ref[...].astype(jnp.float32)       # [TB, C]  (bf16/f32 ingest, f32 compute)
    lbl = labels_ref[...]                         # [TB, 1]  int32
    w = wcls_ref[...].astype(jnp.float32)         # [1, C]

    # One-hot mask built in-kernel (no HBM one-hot). Out-of-range labels
    # (incl. batch-padding rows set to -1) produce an all-zero row.
    cls = jax.lax.broadcasted_iota(jnp.int32, x.shape, 1)   # [TB, C]
    y = (cls == lbl).astype(jnp.float32)                    # [TB, C]

    # alpha: per-example class-balanced weight == w[label] (0 for padded rows).
    alpha = jnp.sum(w * y, axis=1, keepdims=True)           # [TB, 1]

    # Shared transcendental: L = log(1 + exp(-|x|))
    relu_x = jnp.maximum(x, 0.0)
    L = jnp.log1p(jnp.exp(-jnp.abs(x)))

    # binary_cross_entropy_with_logits, reduction='none' (stable form)
    bce = relu_x - x * y + L

    if gamma == 0.0:
        loss = bce
    else:
        # log(1 + exp(-x)) = relu(-x) + L = (relu_x - x) + L   (stable, reuses L)
        loss = jnp.exp(-gamma * (y * x + (relu_x - x) + L)) * bce

    # Partial numerator: sum over this batch tile, keep lane (class) axis.
    acc_ref[...] += jnp.sum(alpha * loss, axis=0, keepdims=True)


def class_balanced_loss(logits, labels, samples_per_cls, no_of_classes,
                        beta, gamma, loss_type="focal", block_batch=512):
    if loss_type != "focal":
        # TODO(synk): 'sigmoid' / 'softmax' branches not implemented (the
        # reference 'sigmoid' branch even passes an invalid kwarg to PyTorch).
        raise NotImplementedError("only loss_type='focal' is implemented")

    B, C = logits.shape
    assert C == no_of_classes

    # --- glue: per-class weights from effective number of samples (tiny) ---
    spc = jnp.asarray(samples_per_cls, dtype=jnp.float32)
    effective_num = 1.0 - jnp.power(jnp.float32(beta), spc)
    weights = (1.0 - beta) / effective_num
    weights = weights / jnp.sum(weights) * no_of_classes
    wcls = weights.reshape(1, C).astype(jnp.float32)

    # --- batch tile sizing: fit double-buffered logits in a conservative VMEM
    # budget (headroom for v7x's 64 MiB physical / 32 MiB scoped VMEM). ---
    itemsize = jnp.dtype(logits.dtype).itemsize
    budget = 20 * 1024 * 1024
    tb_cap = max(8, (budget // (2 * C * itemsize)) // 8 * 8)
    TB = int(min(block_batch, tb_cap, _round_up(B, 8)))
    TB = max(8, (TB // 8) * 8)
    Bp = _round_up(B, TB)

    labels_i32 = labels.astype(jnp.int32)
    logits_p = logits
    labels_p = labels_i32
    if Bp != B:
        # Padded rows get label -1 -> zero one-hot -> alpha = 0 -> zero contribution.
        logits_p = jnp.pad(logits, ((0, Bp - B), (0, 0)))
        labels_p = jnp.pad(labels_i32, (0, Bp - B), constant_values=-1)
    labels_2d = labels_p.reshape(Bp, 1)

    num_tiles = Bp // TB

    partial = pl.pallas_call(
        functools.partial(_cb_focal_kernel, gamma=float(gamma)),
        out_shape=jax.ShapeDtypeStruct((1, C), jnp.float32),
        grid_spec=pltpu.PrefetchScalarGridSpec(
            num_scalar_prefetch=0,
            grid=(num_tiles,),
            in_specs=[
                pl.BlockSpec((TB, C), lambda i: (i, 0)),   # logits tile (native dtype)
                pl.BlockSpec((TB, 1), lambda i: (i, 0)),   # int32 labels tile
                pl.BlockSpec((1, C), lambda i: (0, 0)),    # per-class weights (resident)
            ],
            out_specs=pl.BlockSpec((1, C), lambda i: (0, 0)),  # resident accumulator
        ),
        compiler_params=pltpu.CompilerParams(
            dimension_semantics=("arbitrary",),
            vmem_limit_bytes=32 * 1024 * 1024,
        ),
    )(logits_p, labels_2d, wcls)

    num = jnp.sum(partial)
    # Denominator = sum(one_hot) = number of in-range labels (computed from the
    # tiny original label vector, no in-kernel reduction needed).
    den = jnp.sum(((labels_i32 >= 0) & (labels_i32 < C)).astype(jnp.float32))
    return num / den


def _reference(logits, labels, samples_per_cls, no_of_classes, beta, gamma):
    # pure-JAX reference mirroring the PyTorch code (focal branch)
    spc = jnp.asarray(samples_per_cls, dtype=jnp.float32)
    effective_num = 1.0 - jnp.power(jnp.float32(beta), spc)
    weights = (1.0 - beta) / effective_num
    weights = weights / jnp.sum(weights) * no_of_classes
    y = jax.nn.one_hot(labels, no_of_classes, dtype=jnp.float32)
    alpha = jnp.sum(weights[None, :] * y, axis=1, keepdims=True)
    x = logits.astype(jnp.float32)
    bce = jnp.maximum(x, 0.0) - x * y + jnp.log1p(jnp.exp(-jnp.abs(x)))
    mod = jnp.exp(-gamma * y * x - gamma * jnp.log1p(jnp.exp(-x)))
    return jnp.sum(alpha * mod * bce) / jnp.sum(y)


if __name__ == "__main__":
    no_of_classes = 16
    beta = 0.9999
    gamma = 2.0
    samples_per_cls = [float(10 + 5 * i) for i in range(no_of_classes)]

    key = jax.random.PRNGKey(0)
    k1, k2, k3, k4 = jax.random.split(key, 4)

    # Case 1: small batch, single tile, f32 logits.
    b1 = 8
    logits1 = jax.random.normal(k1, (b1, no_of_classes), dtype=jnp.float32)
    labels1 = jax.random.randint(k2, (b1,), 0, no_of_classes, dtype=jnp.int32)
    out1 = jax.block_until_ready(
        class_balanced_loss(logits1, labels1, samples_per_cls, no_of_classes,
                            beta, gamma, loss_type="focal"))
    ref1 = _reference(logits1, labels1, samples_per_cls, no_of_classes, beta, gamma)
    assert jnp.allclose(out1, ref1, rtol=1e-5, atol=1e-5), (out1, ref1)

    # Case 2: multi-tile grid (3 batch tiles of 8) with bf16 logits ingest.
    b2 = 24
    logits2 = jax.random.normal(k3, (b2, no_of_classes), dtype=jnp.float32).astype(jnp.bfloat16)
    labels2 = jax.random.randint(k4, (b2,), 0, no_of_classes, dtype=jnp.int32)
    out2 = jax.block_until_ready(
        class_balanced_loss(logits2, labels2, samples_per_cls, no_of_classes,
                            beta, gamma, loss_type="focal", block_batch=8))
    ref2 = _reference(logits2, labels2, samples_per_cls, no_of_classes, beta, gamma)
    assert jnp.allclose(out2, ref2, rtol=1e-5, atol=1e-5), (out2, ref2)

    print("KERNEL_OK")
</pallas_src>

<mosaic_0001>
module attributes {stable_mosaic.version = 11 : i64} {
  func.func @_cb_focal_kernel(%arg0: i32, %arg1: memref<8x16xf32, #tpu.memory_space<vmem>>, %arg2: memref<8x1xi32, #tpu.memory_space<vmem>>, %arg3: memref<1x16xf32, #tpu.memory_space<vmem>>, %arg4: memref<1x16xf32, #tpu.memory_space<vmem>>) attributes {dimension_semantics = [#tpu.dimension_semantics<arbitrary>], iteration_bounds = array<i64: 1>, scalar_prefetch = 0 : i64, scratch_operands = 0 : i64, tpu.core_type = #tpu.core_type<tc>, window_params = [{transform_indices = @transform_0, window_bounds = array<i64: 8, 16>}, {transform_indices = @transform_1, window_bounds = array<i64: 8, 1>}, {pipeline_mode = #tpu.pipeline_mode<synchronous>, transform_indices = @transform_2, window_bounds = array<i64: 1, 16>}, {pipeline_mode = #tpu.pipeline_mode<synchronous>, transform_indices = @transform_3, window_bounds = array<i64: 1, 16>}]} {
    %c0_i32 = arith.constant 0 : i32
    %0 = arith.cmpi eq, %arg0, %c0_i32 : i32
    %1 = arith.extui %0 : i1 to i32
    %c0_i32_0 = arith.constant 0 : i32
    %2 = arith.cmpi ne, %1, %c0_i32_0 : i32
    scf.if %2 {
      %cst_14 = arith.constant 0.000000e+00 : f32
      %40 = vector.broadcast %cst_14 : f32 to vector<1x16xf32>
      %c0_15 = arith.constant 0 : index
      %c0_16 = arith.constant 0 : index
      %41 = vector.load %arg4[%c0_15, %c0_16] : memref<1x16xf32, #tpu.memory_space<vmem>>, vector<1x16xf32>
      tpu.vector_store %arg4[%c0_15, %c0_16], %40 {strides = array<i32>} : memref<1x16xf32, #tpu.memory_space<vmem>>, vector<1x16xf32>,
    } else {
    }
    %c0 = arith.constant 0 : index
    %c0_1 = arith.constant 0 : index
    %3 = vector.load %arg1[%c0, %c0_1] : memref<8x16xf32, #tpu.memory_space<vmem>>, vector<8x16xf32>
    %c0_2 = arith.constant 0 : index
    %c0_3 = arith.constant 0 : index
    %4 = vector.load %arg2[%c0_2, %c0_3] : memref<8x1xi32, #tpu.memory_space<vmem>>, vector<8x1xi32>
    %c0_4 = arith.constant 0 : index
    %c0_5 = arith.constant 0 : index
    %5 = vector.load %arg3[%c0_4, %c0_5] : memref<1x16xf32, #tpu.memory_space<vmem>>, vector<1x16xf32>
    %6 = tpu.iota {dimensions = array<i32: 1>} : vector<8x16xi32>
    %7 = vector.broadcast %4 : vector<8x1xi32> to vector<8x16xi32>
    %8 = arith.cmpi eq, %6, %7 : vector<8x16xi32>
    %9 = arith.extui %8 : vector<8x16xi1> to vector<8x16xi32>
    %10 = arith.sitofp %9 : vector<8x16xi32> to vector<8x16xf32>
    %11 = vector.broadcast %5 : vector<1x16xf32> to vector<8x16xf32>
    %12 = arith.mulf %11, %10 : vector<8x16xf32>
    %cst = arith.constant dense<0.000000e+00> : vector<8xf32>
    %13 = vector.multi_reduction <add>, %12, %cst [1] : vector<8x16xf32> to vector<8xf32>
    %14 = vector.shape_cast %13 : vector<8xf32> to vector<8x1xf32>
    %cst_6 = arith.constant 0.000000e+00 : f32
    %15 = vector.broadcast %cst_6 : f32 to vector<8x16xf32>
    %16 = arith.maximumf %3, %15 : vector<8x16xf32>
    %17 = math.absf %3 : vector<8x16xf32>
    %cst_7 = arith.constant 0.000000e+00 : f32
    %18 = vector.broadcast %cst_7 : f32 to vector<8x16xf32>
    %19 = arith.subf %18, %17 : vector<8x16xf32>
    %20 = math.exp %19 : vector<8x16xf32>
    %21 = math.log1p %20 : vector<8x16xf32>
    %22 = arith.mulf %3, %10 : vector<8x16xf32>
    %23 = arith.subf %16, %22 : vector<8x16xf32>
    %24 = arith.addf %23, %21 : vector<8x16xf32>
    %25 = arith.mulf %10, %3 : vector<8x16xf32>
    %26 = arith.subf %16, %3 : vector<8x16xf32>
    %27 = arith.addf %25, %26 : vector<8x16xf32>
    %28 = arith.addf %27, %21 : vector<8x16xf32>
    %cst_8 = arith.constant -2.000000e+00 : f32
    %29 = vector.broadcast %cst_8 : f32 to vector<8x16xf32>
    %30 = arith.mulf %29, %28 : vector<8x16xf32>
    %31 = math.exp %30 : vector<8x16xf32>
    %32 = arith.mulf %31, %24 : vector<8x16xf32>
    %c0_9 = arith.constant 0 : index
    %c0_10 = arith.constant 0 : index
    %33 = vector.load %arg4[%c0_9, %c0_10] : memref<1x16xf32, #tpu.memory_space<vmem>>, vector<1x16xf32>
    %34 = vector.broadcast %14 : vector<8x1xf32> to vector<8x16xf32>
    %35 = arith.mulf %34, %32 : vector<8x16xf32>
    %cst_11 = arith.constant dense<0.000000e+00> : vector<16xf32>
    %36 = vector.multi_reduction <add>, %35, %cst_11 [0] : vector<8x16xf32> to vector<16xf32>
    %37 = vector.shape_cast %36 : vector<16xf32> to vector<1x16xf32>
    %38 = arith.addf %33, %37 : vector<1x16xf32>
    %c0_12 = arith.constant 0 : index
    %c0_13 = arith.constant 0 : index
    %39 = vector.load %arg4[%c0_12, %c0_13] : memref<1x16xf32, #tpu.memory_space<vmem>>, vector<1x16xf32>
    tpu.vector_store %arg4[%c0_12, %c0_13], %38 {strides = array<i32>} : memref<1x16xf32, #tpu.memory_space<vmem>>, vector<1x16xf32>,
    return
  }
  func.func @transform_0(%arg0: i32) -> (i32, i32) {
    %c0_i32 = arith.constant 0 : i32
    %c0_i32_0 = arith.constant 0 : i32
    return %arg0, %c0_i32 : i32, i32
  }
  func.func @transform_1(%arg0: i32) -> (i32, i32) {
    %c0_i32 = arith.constant 0 : i32
    %c0_i32_0 = arith.constant 0 : i32
    return %arg0, %c0_i32 : i32, i32
  }
  func.func @transform_2(%arg0: i32) -> (i32, i32) {
    %c0_i32 = arith.constant 0 : i32
    %c0_i32_0 = arith.constant 0 : i32
    %c0_i32_1 = arith.constant 0 : i32
    return %c0_i32, %c0_i32_0 : i32, i32
  }
  func.func @transform_3(%arg0: i32) -> (i32, i32) {
    %c0_i32 = arith.constant 0 : i32
    %c0_i32_0 = arith.constant 0 : i32
    %c0_i32_1 = arith.constant 0 : i32
    return %c0_i32, %c0_i32_0 : i32, i32
  }
}

</mosaic_0001>

<llo_original>
// kernel: tpu_custom_call.1
$region0: #{tpu_custom_call.1}
  #allocation0 [shape = 'u32[]', space=smem, size = 0x4, offset = 0x4, fixed_abs, tag = 'smem constant byte address 0x4 - core index']
  #allocation1 [shape = 'u32[72,128]{1,0:T(1,128)}', space=vmem, size = 0x9000, scoped, tag = 'internal scratch']
  %s0 = inlined_call_operand.vmem [shape: f32[8,16], index: 0, kind: input, shape index: {}]
  %s1 = inlined_call_operand.vmem [shape: s32[8,1], index: 1, kind: input, shape index: {}]
  %s2 = inlined_call_operand.vmem [shape: f32[1,16], index: 2, kind: input, shape index: {}]
  %s3 = inlined_call_operand.hbm [shape: f32[1,16], index: 3, kind: output, shape index: {}]
  %s4 = sld [smem:[#allocation0]]
  $region26: #{tpu_custom_call.1} parent=0
    _
  %s6 = ssub.s32 1, %s4
  %s7 = scalar_select 0, %s6, %s4
  $region1: #{tpu_custom_call.1} parent=0
    #allocation2 [shape = 'u8[512]{0}', space=vmem, size = 0x400, scoped, tag = 'output window, operand 0, single buffered']
    #allocation3 [shape = 's32[1]{0}', space=sflag, size = 0x4, scoped, tag = 'scoped memory for tpu_custom_call.1']
    %8 = vsyncpa [#allocation3], 0
    // Predicated region
    $region2: #{tpu_custom_call.1} parent=1 // pred_check
      _
    $region3: #{tpu_custom_call.1} parent=1 // pred_check_branch
      %10 = sbr.rel (0) target = $region5
    $region4: #{tpu_custom_call.1} parent=1 // pred_region
      _
    $region5: #{tpu_custom_call.1} parent=1 // pred_fallthru
      _
    // Predicated region
    $region6: #{tpu_custom_call.1} parent=1 // pred_check
      _
    $region7: #{tpu_custom_call.1} parent=1 // pred_check_branch
      %12 = sbr.rel (0) target = $region9
    $region8: #{tpu_custom_call.1} parent=1 // pred_region
      _
    $region9: #{tpu_custom_call.1} parent=1 // pred_fallthru
      _
    // Predicated region
    $region10: #{tpu_custom_call.1} parent=1 // pred_check
      _
    $region11: #{tpu_custom_call.1} parent=1 // pred_check_branch
      %14 = sbr.rel (0) target = $region13
    $region12: #{tpu_custom_call.1} parent=1 // pred_region
      _
    $region13: #{tpu_custom_call.1} parent=1 // pred_fallthru
      _
    %p15 = scmp.eq.s32.totalorder 0, 0
    // Predicated region
    $region14: #{tpu_custom_call.1} parent=1 // pred_check
      %p16 = pneg %p15
    $region15: #{tpu_custom_call.1} parent=1 // pred_check_branch
      %18 = sbr.rel (%p16) target = $region17
    $region16: #{tpu_custom_call.1} parent=1 // pred_region
      %vm19 = vcmask 122880
      %20 = vst.msk [vmem:[#allocation2] sm:$0x1] %vm19, 0.0
    $region17: #{tpu_custom_call.1} parent=1 // pred_fallthru
      _
    %v21 = vld [vmem:[%s0] sm:$0xff]
    %v22 = vld [vmem:[%s1] sm:$0xff]
    %v23 = vld [vmem:[%s2] sm:$0x1]
    %v24 = vlaneseq
    %v25 = vand.u32 %v24, 127
    %26 = vset.pattern.permute.xlu0 0
    %27 = vperm.xlu0 %26, %v22
    %v28 = vpop.permute.xlu0 %27
    %vm29 = vcmp.eq.s32.totalorder %v25, %v28
    %v30 = vsel %vm29, 1, 0
    %v31 = vcvt.s32.f32 %v30
    %v33 = vperm.slane %v23, 0
    %v35 = vmul.f32 %v33, %v31
    %vm36 = vcmask 130048
    %v37 = vsel %vm36, %v35, 0.0
    %38 = vadd.xlane.f32.xlu0 %v37
    %v39 = vpop.xlane.xlu0 %38
    %v40 = vmax.f32 %v21, 0.0
    %v41 = vand.u32 2147483647, %v21
    %v42 = vsub.f32 0.0, %v41
    %v43 = vmul.f32 %v42, 1.442695
    %v44 = vpow.pop %v43
    %v45 = vadd.f32 %v44, 1.0
    %v46 = vlog2.pop %v45
    %v47 = vmul.f32 %v46, 0.6931472
    %v48 = vmul.f32 -0.5, %v44
    %v49 = vadd.f32 %v48, 1.0
    %v50 = vmul.f32 %v49, %v44
    %v51 = vand.u32 2147483647, %v44
    %vm52 = vcmp.lt.f32.partialorder %v51, 0.0004427343
    %v53 = vsel %vm52, %v50, %v47
    %v54 = vmul.f32 %v21, %v31
    %v55 = vsub.f32 %v40, %v54
    %v56 = vadd.f32 %v55, %v53
    %v57 = vsub.f32 %v40, %v21
    %v58 = vadd.f32 %v54, %v57
    %v59 = vadd.f32 %v58, %v53
    %v60 = vmul.f32 %v59, -2.0
    %v61 = vmul.f32 %v60, 1.442695
    %v62 = vpow.pop %v61
    %v63 = vmul.f32 %v62, %v56
    %v64 = vld [vmem:[#allocation2] sm:$0x1]
    %v65 = vmul.f32 %v39, %v63
    %v66 = vsel %vm36, %v65, 0.0
    %v67 = vrot.slane %v66, 4
    %v68 = vadd.f32 %v66, %v67
    %v69 = vrot.slane %v68, 2
    %v70 = vadd.f32 %v68, %v69
    %v71 = vrot.slane %v70, 1
    %v72 = vadd.f32 %v70, %v71
    %v73 = vadd.f32 %v64, %v72
    %vm74 = vcmask 122880
    %75 = vst.msk [vmem:[#allocation2] sm:$0x1] %vm74, %v73
    // Predicated region
    $region18: #{tpu_custom_call.1} parent=1 // pred_check
      _
    $region19: #{tpu_custom_call.1} parent=1 // pred_check_branch
      %77 = sbr.rel (0) target = $region21
    $region20: #{tpu_custom_call.1} parent=1 // pred_region
      %79 = vsyncadd [#allocation3], 0
      %s81 = sshll.u32 [#allocation2], 4
      %s82 = int_to_ptr.vmem [resolvable:$true] %s81
      %s83 = sshll.u32 %s3, 4
      %s84 = int_to_ptr.hbm [resolvable:$true] %s83
      %86 = dma.vmem_to_hbm [thread:$0]  %s82, 16, %s84, [#allocation3]
    $region21: #{tpu_custom_call.1} parent=1 // pred_fallthru
      _
    // Predicated region
    $region22: #{tpu_custom_call.1} parent=1 // pred_check
      _
    $region23: #{tpu_custom_call.1} parent=1 // pred_check_branch
      %88 = sbr.rel (0) target = $region25
    $region24: #{tpu_custom_call.1} parent=1 // pred_region
      %90 = dma.done [#allocation3], 16
    $region25: #{tpu_custom_call.1} parent=1 // pred_fallthru
      _
    %91 = vsyncpa [#allocation3], 1

</llo_original>
